<compile_context>
chip_gen: v7x
topology: tpu7x:2x2x1
jax: 0.10.0
libtpu: 0.0.40
codegen_flags: <defaults>
</compile_context>

<pallas_src>
import functools
import math

import jax
import jax.numpy as jnp
from jax.experimental import pallas as pl
from jax.experimental.pallas import tpu as pltpu


_TARGET_BLOCK_BYTES = 12 << 20          # ~12 MiB of input per grid step.


def _round_up(v, m):
    return ((v + m - 1) // m) * m


def _sublane_multiple(dtype):
    itemsize = jnp.dtype(dtype).itemsize
    return {4: 8, 2: 16, 1: 32}.get(itemsize, 8)


def _vmem_budget():
    """(max double-buffered live bytes, vmem_limit_bytes) per TPU generation."""
    try:
        cap = int(pltpu.get_tpu_info().vmem_capacity_bytes)
    except Exception:
        cap = 64 << 20                   # conservative (v7x-sized) fallback
    if cap <= (64 << 20):                # v7x-class: 64 MiB physical VMEM
        return 28 << 20, 40 << 20
    return 56 << 20, 80 << 20            # v5e / v6e: 128 MiB physical VMEM


def _split_single_step(dim, tile, mult):
    """If a grid axis would have a single step, split it in two (rounded to
    `mult`) so v7x's second TensorCore also gets work."""
    if tile >= dim and dim > mult:
        return min(tile, _round_up(pl.cdiv(dim, 2), mult))
    return tile


def _pick_rows(rows, in_row_bytes, out_row_bytes, sub, half_live):
    """Rows per block: ~_TARGET_BLOCK_BYTES of input, never above half_live."""
    cap = max(1, half_live // (in_row_bytes + out_row_bytes))
    tgt = max(1, _TARGET_BLOCK_BYTES // in_row_bytes)
    tr = min(cap, tgt)
    if tr >= rows:
        return rows                      # rows <= cap, so still within budget
    if tr < sub:
        return min(rows, sub)
    return (tr // sub) * sub


# --------------------------------------------------------------------------
# Kernels: unrolled, lane-aligned elementwise multiplies (pure VPU work).
# --------------------------------------------------------------------------
def _prod_rows_kernel(x_ref, o_ref, *, num_k, seg):
    # Path A.  x_ref: (tile_rows, num_k * seg);  o_ref: (tile_rows, seg).
    acc = x_ref[:, 0:seg]
    for kk in range(1, num_k):
        acc = acc * x_ref[:, kk * seg:(kk + 1) * seg]
    o_ref[...] = acc


def _prod_mid_kernel(x_ref, o_ref, *, num_k):
    # Path B.  x_ref: (tile_rows, num_k, tile_seg);  o_ref: (tile_rows, tile_seg).
    acc = x_ref[:, 0, :]
    for kk in range(1, num_k):
        acc = acc * x_ref[:, kk, :]
    o_ref[...] = acc


def _prod_lead_kernel(x_ref, o_ref, *, num_k):
    # Path C.  x_ref: (num_k, tile_m);  o_ref: (1, tile_m).
    acc = x_ref[0:1, :]
    for kk in range(1, num_k):
        acc = acc * x_ref[kk:kk + 1, :]
    o_ref[...] = acc


def dendritic_forward(x):
    """Pallas implementation of torch.prod(x, dim=2) for rank >= 3 inputs."""
    if x.ndim < 3:
        raise ValueError("Dendritic expects an input of rank >= 3 (prod over dim 2).")

    d0, d1, num_k = int(x.shape[0]), int(x.shape[1]), int(x.shape[2])
    rest = tuple(int(d) for d in x.shape[3:])
    rows = d0 * d1
    seg = math.prod(rest) if rest else 1

    itemsize = jnp.dtype(x.dtype).itemsize
    sub = _sublane_multiple(x.dtype)
    max_live, vmem_limit = _vmem_budget()
    half_live = max_live // 2            # per-block (in + out); x2 for double buffer

    cost = pl.CostEstimate(
        flops=max(0, num_k - 1) * rows * seg,
        transcendentals=0,
        bytes_accessed=(num_k + 1) * rows * seg * itemsize,
    )

    if seg >= 128:
        in_row = num_k * seg * itemsize
        out_row = seg * itemsize
        full_row_fits = min(rows, sub) * (in_row + out_row) <= half_live
        if seg % 128 == 0 and full_row_fits:
            # ---- Path A: 2-D full-row blocks (one contiguous DMA per block).
            tile_rows = _pick_rows(rows, in_row, out_row, sub, half_live)
            tile_rows = _split_single_step(rows, tile_rows, sub)
            in_blk, out_blk = tile_rows * in_row, tile_rows * out_row
            kernel = functools.partial(_prod_rows_kernel, num_k=num_k, seg=seg)
            grid = (pl.cdiv(rows, tile_rows),)
            in_specs = [pl.BlockSpec((tile_rows, num_k * seg), lambda i: (i, 0))]
            out_specs = pl.BlockSpec((tile_rows, seg), lambda i: (i, 0))
            dim_sem = ("parallel",)
            x_in = x.reshape(rows, num_k * seg)
        else:
            # ---- Path B: 3-D (rows, K, seg), seg tiled in 128-multiples so
            # every K-slice stays lane-aligned and VMEM stays bounded.
            base_rows = min(rows, sub)
            cap_seg = (half_live // (base_rows * (num_k + 1) * itemsize)) // 128 * 128
            cap_seg = max(cap_seg, 128)
            seg_floor = (seg // 128) * 128
            tile_seg = max(128, min(seg_floor, cap_seg))
            in_row = num_k * tile_seg * itemsize
            out_row = tile_seg * itemsize
            tile_rows = _pick_rows(rows, in_row, out_row, sub, half_live)
            if pl.cdiv(seg, tile_seg) == 1:
                tile_rows = _split_single_step(rows, tile_rows, sub)
            in_blk, out_blk = tile_rows * in_row, tile_rows * out_row
            kernel = functools.partial(_prod_mid_kernel, num_k=num_k)
            grid = (pl.cdiv(rows, tile_rows), pl.cdiv(seg, tile_seg))
            in_specs = [pl.BlockSpec((tile_rows, num_k, tile_seg),
                                     lambda i, j: (i, 0, j))]
            out_specs = pl.BlockSpec((tile_rows, tile_seg), lambda i, j: (i, j))
            dim_sem = ("parallel", "parallel")
            x_in = x.reshape(rows, num_k, seg)
        out_2d_shape = (rows, seg)
    else:
        # ---- Path C: seg < 128 (e.g. rank-3 input).  Move K to the front and
        # flatten everything else into one lane axis -> lane-dense output.
        total = rows * seg
        if total < 128:
            tile_m = total               # tiny input; single (padded) block
        else:
            cap_m = (half_live // ((num_k + 1) * itemsize)) // 128 * 128
            tgt_m = (_TARGET_BLOCK_BYTES // (num_k * itemsize)) // 128 * 128
            tile_m = max(128, min(cap_m, tgt_m))
            tile_m = min(tile_m, (total // 128) * 128)
            tile_m = _split_single_step(total, tile_m, 128)
        in_blk, out_blk = num_k * tile_m * itemsize, tile_m * itemsize
        kernel = functools.partial(_prod_lead_kernel, num_k=num_k)
        grid = (pl.cdiv(total, tile_m),)
        in_specs = [pl.BlockSpec((num_k, tile_m), lambda j: (0, j))]
        out_specs = pl.BlockSpec((1, tile_m), lambda j: (0, j))
        dim_sem = ("parallel",)
        x_in = jnp.moveaxis(x, 2, 0).reshape(num_k, total)
        out_2d_shape = (1, total)

    # Double-buffered in+out blocks plus headroom, within the per-gen ceiling.
    vmem_limit = int(max(vmem_limit, 2 * (in_blk + out_blk) + (4 << 20)))

    out = pl.pallas_call(
        kernel,
        out_shape=jax.ShapeDtypeStruct(out_2d_shape, x.dtype),
        grid_spec=pltpu.PrefetchScalarGridSpec(
            num_scalar_prefetch=0,
            grid=grid,
            in_specs=in_specs,
            out_specs=out_specs,
        ),
        compiler_params=pltpu.CompilerParams(
            dimension_semantics=dim_sem,
            vmem_limit_bytes=vmem_limit,
        ),
        cost_estimate=cost,
    )(x_in)

    return out.reshape((d0, d1) + rest)


if __name__ == "__main__":
    # Conv-style dendritic input: batch=2, channels=4, K=8 dendritic inputs,
    # 16x16 spatial.  torch.prod(x, 2) -> (2, 4, 16, 16).
    N, C, K, H, W = 2, 4, 8, 16, 16

    key = jax.random.PRNGKey(0)
    x = jax.random.normal(key, (N, C, K, H, W), dtype=jnp.float32)

    y = dendritic_forward(x)
    y = jax.block_until_ready(y)

    # Reference check in plain JAX (same semantics as the PyTorch forward).
    y_ref = jnp.prod(x, axis=2)
    assert y.shape == y_ref.shape == (N, C, H, W)
    assert jnp.allclose(y, y_ref, rtol=1e-5, atol=1e-6), float(
        jnp.max(jnp.abs(y - y_ref)))

    print("KERNEL_OK")
</pallas_src>

<mosaic_0001>
module attributes {stable_mosaic.version = 11 : i64} {
  func.func @_prod_rows_kernel(%arg0: i32, %arg1: memref<8x2048xf32, #tpu.memory_space<vmem>>, %arg2: memref<8x256xf32, #tpu.memory_space<vmem>>) attributes {dimension_semantics = [#tpu.dimension_semantics<parallel>], iteration_bounds = array<i64: 1>, scalar_prefetch = 0 : i64, scratch_operands = 0 : i64, tpu.core_type = #tpu.core_type<tc>, window_params = [{transform_indices = @transform_0, window_bounds = array<i64: 8, 2048>}, {transform_indices = @transform_1, window_bounds = array<i64: 8, 256>}]} {
    %c0 = arith.constant 0 : index
    %c0_0 = arith.constant 0 : index
    %0 = vector.load %arg1[%c0, %c0_0] : memref<8x2048xf32, #tpu.memory_space<vmem>>, vector<8x256xf32>
    %c0_1 = arith.constant 0 : index
    %c256 = arith.constant 256 : index
    %1 = vector.load %arg1[%c0_1, %c256] : memref<8x2048xf32, #tpu.memory_space<vmem>>, vector<8x256xf32>
    %2 = arith.mulf %0, %1 : vector<8x256xf32>
    %c0_2 = arith.constant 0 : index
    %c512 = arith.constant 512 : index
    %3 = vector.load %arg1[%c0_2, %c512] : memref<8x2048xf32, #tpu.memory_space<vmem>>, vector<8x256xf32>
    %4 = arith.mulf %2, %3 : vector<8x256xf32>
    %c0_3 = arith.constant 0 : index
    %c768 = arith.constant 768 : index
    %5 = vector.load %arg1[%c0_3, %c768] : memref<8x2048xf32, #tpu.memory_space<vmem>>, vector<8x256xf32>
    %6 = arith.mulf %4, %5 : vector<8x256xf32>
    %c0_4 = arith.constant 0 : index
    %c1024 = arith.constant 1024 : index
    %7 = vector.load %arg1[%c0_4, %c1024] : memref<8x2048xf32, #tpu.memory_space<vmem>>, vector<8x256xf32>
    %8 = arith.mulf %6, %7 : vector<8x256xf32>
    %c0_5 = arith.constant 0 : index
    %c1280 = arith.constant 1280 : index
    %9 = vector.load %arg1[%c0_5, %c1280] : memref<8x2048xf32, #tpu.memory_space<vmem>>, vector<8x256xf32>
    %10 = arith.mulf %8, %9 : vector<8x256xf32>
    %c0_6 = arith.constant 0 : index
    %c1536 = arith.constant 1536 : index
    %11 = vector.load %arg1[%c0_6, %c1536] : memref<8x2048xf32, #tpu.memory_space<vmem>>, vector<8x256xf32>
    %12 = arith.mulf %10, %11 : vector<8x256xf32>
    %c0_7 = arith.constant 0 : index
    %c1792 = arith.constant 1792 : index
    %13 = vector.load %arg1[%c0_7, %c1792] : memref<8x2048xf32, #tpu.memory_space<vmem>>, vector<8x256xf32>
    %14 = arith.mulf %12, %13 : vector<8x256xf32>
    %c0_8 = arith.constant 0 : index
    %c0_9 = arith.constant 0 : index
    %15 = vector.load %arg2[%c0_8, %c0_9] : memref<8x256xf32, #tpu.memory_space<vmem>>, vector<8x256xf32>
    tpu.vector_store %arg2[%c0_8, %c0_9], %14 {strides = array<i32>} : memref<8x256xf32, #tpu.memory_space<vmem>>, vector<8x256xf32>,
    return
  }
  func.func @transform_0(%arg0: i32) -> (i32, i32) {
    %c0_i32 = arith.constant 0 : i32
    %c0_i32_0 = arith.constant 0 : i32
    return %arg0, %c0_i32 : i32, i32
  }
  func.func @transform_1(%arg0: i32) -> (i32, i32) {
    %c0_i32 = arith.constant 0 : i32
    %c0_i32_0 = arith.constant 0 : i32
    return %arg0, %c0_i32 : i32, i32
  }
}

</mosaic_0001>

<llo_original>
// kernel: tpu_custom_call.1
$region0: #{tpu_custom_call.1}
  #allocation0 [shape = 'u32[]', space=smem, size = 0x4, offset = 0x4, fixed_abs, tag = 'smem constant byte address 0x4 - core index']
  #allocation1 [shape = 'u32[144,128]{1,0:T(1,128)}', space=vmem, size = 0x12000, scoped, tag = 'internal scratch']
  %s0 = inlined_call_operand.hbm [shape: f32[8,2048], index: 0, kind: input, shape index: {}]
  %s1 = inlined_call_operand.hbm [shape: f32[8,256], index: 1, kind: output, shape index: {}]
  %s2 = sld [smem:[#allocation0]]
  $region18: #{tpu_custom_call.1} parent=0
    _
  %s4 = ssub.s32 1, %s2
  %s5 = scalar_select 0, %s4, %s2
  $region1: #{tpu_custom_call.1} parent=0
    #allocation2 [shape = 'u8[65536]{0}', space=vmem, size = 0x10000, scoped, tag = 'input window, operand 0, single buffered']
    #allocation3 [shape = 's32[1]{0}', space=sflag, size = 0x4, scoped, tag = 'scoped memory for tpu_custom_call.1']
    #allocation4 [shape = 's32[1]{0}', space=sflag, size = 0x4, scoped, tag = 'scoped memory for tpu_custom_call.1']
    #allocation5 [shape = 'u8[8192]{0}', space=vmem, size = 0x2000, scoped, tag = 'output window, operand 0, single buffered']
    %6 = vsyncpa [#allocation3], 0
    %7 = vsyncpa [#allocation4], 0
    // Predicated region
    $region2: #{tpu_custom_call.1} parent=1 // pred_check
      _
    $region3: #{tpu_custom_call.1} parent=1 // pred_check_branch
      %9 = sbr.rel (0) target = $region5
    $region4: #{tpu_custom_call.1} parent=1 // pred_region
      %s11 = ssub.s32 2048, 2048
      %12 = vsyncadd [#allocation3], %s11
      %s14 = sshll.u32 [#allocation2], 4
      %s15 = int_to_ptr.vmem [resolvable:$true] %s14
      %17 = dma.hbm_to_vmem [thread:$0]  %s0, 2048, %s15, [#allocation3]
    $region5: #{tpu_custom_call.1} parent=1 // pred_fallthru
      _
    // Predicated region
    $region6: #{tpu_custom_call.1} parent=1 // pred_check
      _
    $region7: #{tpu_custom_call.1} parent=1 // pred_check_branch
      %19 = sbr.rel (0) target = $region9
    $region8: #{tpu_custom_call.1} parent=1 // pred_region
      %20 = dma.done [#allocation3], 2048
    $region9: #{tpu_custom_call.1} parent=1 // pred_fallthru
      _
    %v21 = vld [vmem:[#allocation2] sm:$0xff]
    %v22 = vld [vmem:[#allocation2 + $0x8] sm:$0xff]
    %v23 = vld [vmem:[#allocation2 + $0x10] sm:$0xff]
    %v24 = vld [vmem:[#allocation2 + $0x18] sm:$0xff]
    %v25 = vmul.f32 %v21, %v23
    %v26 = vmul.f32 %v22, %v24
    %v27 = vld [vmem:[#allocation2 + $0x20] sm:$0xff]
    %v28 = vld [vmem:[#allocation2 + $0x28] sm:$0xff]
    %v29 = vmul.f32 %v25, %v27
    %v30 = vmul.f32 %v26, %v28
    %v31 = vld [vmem:[#allocation2 + $0x30] sm:$0xff]
    %v32 = vld [vmem:[#allocation2 + $0x38] sm:$0xff]
    %v33 = vmul.f32 %v29, %v31
    %v34 = vmul.f32 %v30, %v32
    %v35 = vld [vmem:[#allocation2 + $0x40] sm:$0xff]
    %v36 = vld [vmem:[#allocation2 + $0x48] sm:$0xff]
    %v37 = vmul.f32 %v33, %v35
    %v38 = vmul.f32 %v34, %v36
    %v39 = vld [vmem:[#allocation2 + $0x50] sm:$0xff]
    %v40 = vld [vmem:[#allocation2 + $0x58] sm:$0xff]
    %v41 = vmul.f32 %v37, %v39
    %v42 = vmul.f32 %v38, %v40
    %v43 = vld [vmem:[#allocation2 + $0x60] sm:$0xff]
    %v44 = vld [vmem:[#allocation2 + $0x68] sm:$0xff]
    %v45 = vmul.f32 %v41, %v43
    %v46 = vmul.f32 %v42, %v44
    %v47 = vld [vmem:[#allocation2 + $0x70] sm:$0xff]
    %v48 = vld [vmem:[#allocation2 + $0x78] sm:$0xff]
    %v49 = vmul.f32 %v45, %v47
    %v50 = vmul.f32 %v46, %v48
    %51 = vst [vmem:[#allocation5] sm:$0xff] %v49
    %52 = vst [vmem:[#allocation5 + $0x8] sm:$0xff] %v50
    // Predicated region
    $region10: #{tpu_custom_call.1} parent=1 // pred_check
      _
    $region11: #{tpu_custom_call.1} parent=1 // pred_check_branch
      %54 = sbr.rel (0) target = $region13
    $region12: #{tpu_custom_call.1} parent=1 // pred_region
      %s56 = ssub.s32 256, 256
      %57 = vsyncadd [#allocation4], %s56
      %s59 = sshll.u32 [#allocation5], 4
      %s60 = int_to_ptr.vmem [resolvable:$true] %s59
      %62 = dma.vmem_to_hbm [thread:$0]  %s60, 256, %s1, [#allocation4]
    $region13: #{tpu_custom_call.1} parent=1 // pred_fallthru
      _
    // Predicated region
    $region14: #{tpu_custom_call.1} parent=1 // pred_check
      _
    $region15: #{tpu_custom_call.1} parent=1 // pred_check_branch
      %64 = sbr.rel (0) target = $region17
    $region16: #{tpu_custom_call.1} parent=1 // pred_region
      %65 = dma.done [#allocation4], 256
    $region17: #{tpu_custom_call.1} parent=1 // pred_fallthru
      _
    %66 = vsyncpa [#allocation3], 1
    %67 = vsyncpa [#allocation4], 1

</llo_original>
